<compile_context>
chip_gen: v5e
topology: v5e:2x2
jax: 0.10.0
libtpu: 0.0.40
codegen_flags: <defaults>
</compile_context>

<pallas_src>
import jax
import jax.numpy as jnp
from jax.experimental import pallas as pl
from jax.experimental.pallas import tpu as pltpu


def _round_up(x, m):
    return ((x + m - 1) // m) * m


# ----------------------------------------------------------------------------
# Kernel
# ----------------------------------------------------------------------------
def q_critic_kernel(obs_ref, act_ref,
                    w1o_ref, w1a_ref, b1_ref,
                    w2_ref, b2_ref,
                    w3_ref, b3_ref,
                    out_ref):
    """Fused twin-Q MLP: 3 matmuls, block-diagonal layers 2/3, (TB, 2) output."""
    # Layer 1: split contraction over obs / action (avoids wrapper-side concat).
    # fp32 -> bf16 casts happen in-kernel (VPU), not as a separate XLA pass.
    obs = obs_ref[...].astype(jnp.bfloat16)
    act = act_ref[...].astype(jnp.bfloat16)
    h = (jnp.dot(obs, w1o_ref[...], preferred_element_type=jnp.float32)
         + jnp.dot(act, w1a_ref[...], preferred_element_type=jnp.float32)
         + b1_ref[...])
    h = jnp.maximum(h, 0.0)                                   # ReLU (fp32)

    # Layer 2: block-diagonal fused twin weights (lane dim = 2*h2 = 128).
    h = jnp.dot(h.astype(jnp.bfloat16), w2_ref[...],
                preferred_element_type=jnp.float32) + b2_ref[...]
    h = jnp.maximum(h, 0.0)                                   # ReLU (fp32)

    # Layer 3: (TB, 2); column 0 = Q1, column 1 = Q2.
    out_ref[...] = (jnp.dot(h.astype(jnp.bfloat16), w3_ref[...],
                            preferred_element_type=jnp.float32) + b3_ref[...])


# ----------------------------------------------------------------------------
# Parameter handling
# ----------------------------------------------------------------------------
def init_q_critic_params(key, num_states, num_actions, hidden_dims=(128, 64)):
    """PyTorch-Linear-style init. Weights stored (in, out); biases (1, out)."""
    shapes = [num_states + num_actions] + list(hidden_dims) + [1]
    params = []
    for _net in range(2):  # Q1, Q2
        for j in range(len(shapes) - 1):
            fan_in, fan_out = shapes[j], shapes[j + 1]
            key, kw, kb = jax.random.split(key, 3)
            bound = 1.0 / (fan_in ** 0.5)
            w = jax.random.uniform(kw, (fan_in, fan_out), jnp.float32, -bound, bound)
            b = jax.random.uniform(kb, (1, fan_out), jnp.float32, -bound, bound)
            params += [w, b]
    return tuple(params)


def fuse_q_critic_params(params, num_states, compute_dtype=jnp.bfloat16):
    """Fuse the twin networks into one wide / block-diagonal parameter set."""
    (w11, b11, w12, b12, w13, b13,
     w21, b21, w22, b22, w23, b23) = params
    h1 = w11.shape[1]
    h2 = w12.shape[1]

    # Layer 1: concat outputs -> (in, 2*h1); split rows into obs / action halves.
    w1 = jnp.concatenate([w11, w21], axis=1)
    w1o = w1[:num_states, :]
    w1a = w1[num_states:, :]
    b1 = jnp.concatenate([b11, b21], axis=1)

    # Layer 2: block-diagonal (2*h1, 2*h2); zeros off-diagonal keep Q1/Q2 independent.
    w2 = jnp.zeros((2 * h1, 2 * h2), w12.dtype)
    w2 = w2.at[:h1, :h2].set(w12).at[h1:, h2:].set(w22)
    b2 = jnp.concatenate([b12, b22], axis=1)

    # Layer 3: block-diagonal (2*h2, 2); col 0 = Q1, col 1 = Q2.
    w3 = jnp.zeros((2 * h2, 2), w13.dtype)
    w3 = w3.at[:h2, 0:1].set(w13).at[h2:, 1:2].set(w23)
    b3 = jnp.concatenate([b13, b23], axis=1)

    return (w1o.astype(compute_dtype), w1a.astype(compute_dtype),
            b1.astype(jnp.float32),
            w2.astype(compute_dtype), b2.astype(jnp.float32),
            w3.astype(compute_dtype), b3.astype(jnp.float32))


# ----------------------------------------------------------------------------
# Forward wrapper
# ----------------------------------------------------------------------------
@jax.jit
def q_critic_forward(obs, action, fused_params):
    """obs: (B, *obs_dims), action: (B, num_actions). Returns (Q1, Q2), each (B, 1)."""
    B = obs.shape[0]
    obs = obs.reshape(B, -1).astype(jnp.float32)   # nn.Flatten()
    action = action.astype(jnp.float32)

    w1o, w1a, b1, w2, b2, w3, b3 = fused_params
    num_states = w1o.shape[0]
    num_actions = w1a.shape[0]
    h1x2 = w1o.shape[1]
    h2x2 = w2.shape[1]

    # Batch tile: one block if the (8-rounded) batch fits in 512 rows
    # (minimizes padding + grid-step overhead); otherwise 512-row tiles.
    TB = min(512, _round_up(B, 8))
    B_pad = _round_up(B, TB)
    if B_pad != B:
        obs = jnp.pad(obs, ((0, B_pad - B), (0, 0)))
        action = jnp.pad(action, ((0, B_pad - B), (0, 0)))

    num_blocks = B_pad // TB
    batched = lambda i: (i, 0)     # activation / output tiles march over batch
    resident = lambda i: (0, 0)    # params stay resident across grid steps

    out = pl.pallas_call(
        q_critic_kernel,
        out_shape=jax.ShapeDtypeStruct((B_pad, 2), jnp.float32),
        grid=(num_blocks,),
        in_specs=[
            pl.BlockSpec((TB, num_states), batched),
            pl.BlockSpec((TB, num_actions), batched),
            pl.BlockSpec((num_states, h1x2), resident),
            pl.BlockSpec((num_actions, h1x2), resident),
            pl.BlockSpec((1, h1x2), resident),
            pl.BlockSpec((h1x2, h2x2), resident),
            pl.BlockSpec((1, h2x2), resident),
            pl.BlockSpec((h2x2, 2), resident),
            pl.BlockSpec((1, 2), resident),
        ],
        out_specs=pl.BlockSpec((TB, 2), batched),
        compiler_params=pltpu.CompilerParams(
            dimension_semantics=("parallel",)),
    )(obs, action, w1o, w1a, b1, w2, b2, w3, b3)

    q = out[:B]
    return q[:, 0:1], q[:, 1:2]


# ----------------------------------------------------------------------------
# References
# ----------------------------------------------------------------------------
def q_critic_reference(obs, action, params):
    """Full-fp32 plain-JAX reference (PyTorch semantics)."""
    B = obs.shape[0]
    x = jnp.concatenate([obs.reshape(B, -1), action], axis=-1)
    (w11, b11, w12, b12, w13, b13,
     w21, b21, w22, b22, w23, b23) = params

    def mlp(w1, b1, w2, b2, w3, b3):
        h = jnp.maximum(x @ w1 + b1, 0.0)
        h = jnp.maximum(h @ w2 + b2, 0.0)
        return h @ w3 + b3

    return (mlp(w11, b11, w12, b12, w13, b13),
            mlp(w21, b21, w22, b22, w23, b23))


def q_critic_reference_bf16(obs, action, params):
    """Precision-matched reference (bf16 matmul operands, fp32 accumulate)."""
    B = obs.shape[0]
    x = jnp.concatenate([obs.reshape(B, -1), action], axis=-1).astype(jnp.bfloat16)
    (w11, b11, w12, b12, w13, b13,
     w21, b21, w22, b22, w23, b23) = params

    def mlp(w1, b1, w2, b2, w3, b3):
        h = jnp.dot(x, w1.astype(jnp.bfloat16),
                    preferred_element_type=jnp.float32) + b1
        h = jnp.maximum(h, 0.0).astype(jnp.bfloat16)
        h = jnp.dot(h, w2.astype(jnp.bfloat16),
                    preferred_element_type=jnp.float32) + b2
        h = jnp.maximum(h, 0.0).astype(jnp.bfloat16)
        return jnp.dot(h, w3.astype(jnp.bfloat16),
                       preferred_element_type=jnp.float32) + b3

    return (mlp(w11, b11, w12, b12, w13, b13),
            mlp(w21, b21, w22, b22, w23, b23))


# ----------------------------------------------------------------------------
if __name__ == "__main__":
    num_states = 16
    num_actions = 4
    batch = 8

    key = jax.random.PRNGKey(0)
    k_obs, k_act, k_par = jax.random.split(key, 3)

    obs = jax.random.normal(k_obs, (batch, num_states), jnp.float32)
    action = jax.random.normal(k_act, (batch, num_actions), jnp.float32)
    params = init_q_critic_params(k_par, num_states, num_actions)
    fused = fuse_q_critic_params(params, num_states)

    # --- small batch (single-block grid) ---
    q1, q2 = q_critic_forward(obs, action, fused)
    jax.block_until_ready((q1, q2))
    assert q1.shape == (batch, 1) and q2.shape == (batch, 1)

    q1_m, q2_m = q_critic_reference_bf16(obs, action, params)
    assert jnp.allclose(q1, q1_m, atol=1e-2, rtol=1e-2)
    assert jnp.allclose(q2, q2_m, atol=1e-2, rtol=1e-2)

    q1_f, q2_f = q_critic_reference(obs, action, params)
    assert jnp.allclose(q1, q1_f, atol=5e-2, rtol=5e-2)
    assert jnp.allclose(q2, q2_f, atol=5e-2, rtol=5e-2)

    # --- larger, non-aligned batch exercises padding + single big tile ---
    big_batch = 300
    k_obs2, k_act2 = jax.random.split(jax.random.PRNGKey(1))
    obs_b = jax.random.normal(k_obs2, (big_batch, num_states), jnp.float32)
    act_b = jax.random.normal(k_act2, (big_batch, num_actions), jnp.float32)
    q1b, q2b = q_critic_forward(obs_b, act_b, fused)
    jax.block_until_ready((q1b, q2b))
    q1b_m, q2b_m = q_critic_reference_bf16(obs_b, act_b, params)
    assert q1b.shape == (big_batch, 1) and q2b.shape == (big_batch, 1)
    assert jnp.allclose(q1b, q1b_m, atol=1e-2, rtol=1e-2)
    assert jnp.allclose(q2b, q2b_m, atol=1e-2, rtol=1e-2)

    # --- very large batch exercises the multi-block (grid > 1) path ---
    huge_batch = 1200
    k_obs3, k_act3 = jax.random.split(jax.random.PRNGKey(2))
    obs_h = jax.random.normal(k_obs3, (huge_batch, num_states), jnp.float32)
    act_h = jax.random.normal(k_act3, (huge_batch, num_actions), jnp.float32)
    q1h, q2h = q_critic_forward(obs_h, act_h, fused)
    jax.block_until_ready((q1h, q2h))
    q1h_m, q2h_m = q_critic_reference_bf16(obs_h, act_h, params)
    assert jnp.allclose(q1h, q1h_m, atol=1e-2, rtol=1e-2)
    assert jnp.allclose(q2h, q2h_m, atol=1e-2, rtol=1e-2)

    print("KERNEL_OK")
</pallas_src>

<mosaic_0001>
module attributes {stable_mosaic.version = 11 : i64} {
  func.func @q_critic_kernel(%arg0: i32, %arg1: memref<8x16xf32, #tpu.memory_space<vmem>>, %arg2: memref<8x4xf32, #tpu.memory_space<vmem>>, %arg3: memref<16x256xbf16, #tpu.memory_space<vmem>>, %arg4: memref<4x256xbf16, #tpu.memory_space<vmem>>, %arg5: memref<1x256xf32, #tpu.memory_space<vmem>>, %arg6: memref<256x128xbf16, #tpu.memory_space<vmem>>, %arg7: memref<1x128xf32, #tpu.memory_space<vmem>>, %arg8: memref<128x2xbf16, #tpu.memory_space<vmem>>, %arg9: memref<1x2xf32, #tpu.memory_space<vmem>>, %arg10: memref<8x2xf32, #tpu.memory_space<vmem>>) attributes {dimension_semantics = [#tpu.dimension_semantics<parallel>], iteration_bounds = array<i64: 1>, scalar_prefetch = 0 : i64, scratch_operands = 0 : i64, tpu.core_type = #tpu.core_type<tc>, window_params = [{transform_indices = @transform_0, window_bounds = array<i64: 8, 16>}, {transform_indices = @transform_1, window_bounds = array<i64: 8, 4>}, {pipeline_mode = #tpu.pipeline_mode<synchronous>, transform_indices = @transform_2, window_bounds = array<i64: 16, 256>}, {pipeline_mode = #tpu.pipeline_mode<synchronous>, transform_indices = @transform_3, window_bounds = array<i64: 4, 256>}, {pipeline_mode = #tpu.pipeline_mode<synchronous>, transform_indices = @transform_4, window_bounds = array<i64: 1, 256>}, {pipeline_mode = #tpu.pipeline_mode<synchronous>, transform_indices = @transform_5, window_bounds = array<i64: 256, 128>}, {pipeline_mode = #tpu.pipeline_mode<synchronous>, transform_indices = @transform_6, window_bounds = array<i64: 1, 128>}, {pipeline_mode = #tpu.pipeline_mode<synchronous>, transform_indices = @transform_7, window_bounds = array<i64: 128, 2>}, {pipeline_mode = #tpu.pipeline_mode<synchronous>, transform_indices = @transform_8, window_bounds = array<i64: 1, 2>}, {transform_indices = @transform_9, window_bounds = array<i64: 8, 2>}]} {
    %c0 = arith.constant 0 : index
    %c0_0 = arith.constant 0 : index
    %0 = vector.load %arg1[%c0, %c0_0] : memref<8x16xf32, #tpu.memory_space<vmem>>, vector<8x16xf32>
    %1 = arith.truncf %0 : vector<8x16xf32> to vector<8x16xbf16>
    %c0_1 = arith.constant 0 : index
    %c0_2 = arith.constant 0 : index
    %2 = vector.load %arg2[%c0_1, %c0_2] : memref<8x4xf32, #tpu.memory_space<vmem>>, vector<8x4xf32>
    %3 = arith.truncf %2 : vector<8x4xf32> to vector<8x4xbf16>
    %c0_3 = arith.constant 0 : index
    %c0_4 = arith.constant 0 : index
    %4 = vector.load %arg3[%c0_3, %c0_4] : memref<16x256xbf16, #tpu.memory_space<vmem>>, vector<16x256xbf16>
    %cst = arith.constant dense<0.000000e+00> : vector<8x256xf32>
    %5 = tpu.matmul %1, %4, %cst {dimension_numbers = #tpu.dot_dimension_numbers<[1], [0], [0], [1], [0, 0, 1, 1], [], []>} : vector<8x16xbf16>, vector<16x256xbf16>, vector<8x256xf32> -> vector<8x256xf32>
    %c0_5 = arith.constant 0 : index
    %c0_6 = arith.constant 0 : index
    %6 = vector.load %arg4[%c0_5, %c0_6] : memref<4x256xbf16, #tpu.memory_space<vmem>>, vector<4x256xbf16>
    %cst_7 = arith.constant dense<0.000000e+00> : vector<8x256xf32>
    %7 = tpu.matmul %3, %6, %cst_7 {dimension_numbers = #tpu.dot_dimension_numbers<[1], [0], [0], [1], [0, 0, 1, 1], [], []>} : vector<8x4xbf16>, vector<4x256xbf16>, vector<8x256xf32> -> vector<8x256xf32>
    %8 = arith.addf %5, %7 : vector<8x256xf32>
    %c0_8 = arith.constant 0 : index
    %c0_9 = arith.constant 0 : index
    %9 = vector.load %arg5[%c0_8, %c0_9] : memref<1x256xf32, #tpu.memory_space<vmem>>, vector<1x256xf32>
    %10 = vector.broadcast %9 : vector<1x256xf32> to vector<8x256xf32>
    %11 = arith.addf %8, %10 : vector<8x256xf32>
    %cst_10 = arith.constant 0.000000e+00 : f32
    %12 = vector.broadcast %cst_10 : f32 to vector<8x256xf32>
    %13 = arith.maximumf %11, %12 : vector<8x256xf32>
    %14 = arith.truncf %13 : vector<8x256xf32> to vector<8x256xbf16>
    %c0_11 = arith.constant 0 : index
    %c0_12 = arith.constant 0 : index
    %15 = vector.load %arg6[%c0_11, %c0_12] : memref<256x128xbf16, #tpu.memory_space<vmem>>, vector<256x128xbf16>
    %cst_13 = arith.constant dense<0.000000e+00> : vector<8x128xf32>
    %16 = tpu.matmul %14, %15, %cst_13 {dimension_numbers = #tpu.dot_dimension_numbers<[1], [0], [0], [1], [0, 0, 1, 1], [], []>} : vector<8x256xbf16>, vector<256x128xbf16>, vector<8x128xf32> -> vector<8x128xf32>
    %c0_14 = arith.constant 0 : index
    %c0_15 = arith.constant 0 : index
    %17 = vector.load %arg7[%c0_14, %c0_15] : memref<1x128xf32, #tpu.memory_space<vmem>>, vector<1x128xf32>
    %18 = vector.broadcast %17 : vector<1x128xf32> to vector<8x128xf32>
    %19 = arith.addf %16, %18 : vector<8x128xf32>
    %cst_16 = arith.constant 0.000000e+00 : f32
    %20 = vector.broadcast %cst_16 : f32 to vector<8x128xf32>
    %21 = arith.maximumf %19, %20 : vector<8x128xf32>
    %22 = arith.truncf %21 : vector<8x128xf32> to vector<8x128xbf16>
    %c0_17 = arith.constant 0 : index
    %c0_18 = arith.constant 0 : index
    %23 = vector.load %arg8[%c0_17, %c0_18] : memref<128x2xbf16, #tpu.memory_space<vmem>>, vector<128x2xbf16>
    %cst_19 = arith.constant dense<0.000000e+00> : vector<8x2xf32>
    %24 = tpu.matmul %22, %23, %cst_19 {dimension_numbers = #tpu.dot_dimension_numbers<[1], [0], [0], [1], [0, 0, 1, 1], [], []>} : vector<8x128xbf16>, vector<128x2xbf16>, vector<8x2xf32> -> vector<8x2xf32>
    %c0_20 = arith.constant 0 : index
    %c0_21 = arith.constant 0 : index
    %25 = vector.load %arg9[%c0_20, %c0_21] : memref<1x2xf32, #tpu.memory_space<vmem>>, vector<1x2xf32>
    %26 = vector.broadcast %25 : vector<1x2xf32> to vector<8x2xf32>
    %27 = arith.addf %24, %26 : vector<8x2xf32>
    %c0_22 = arith.constant 0 : index
    %c0_23 = arith.constant 0 : index
    %28 = vector.load %arg10[%c0_22, %c0_23] : memref<8x2xf32, #tpu.memory_space<vmem>>, vector<8x2xf32>
    tpu.vector_store %arg10[%c0_22, %c0_23], %27 {strides = array<i32>} : memref<8x2xf32, #tpu.memory_space<vmem>>, vector<8x2xf32>,
    return
  }
  func.func @transform_0(%arg0: i32) -> (i32, i32) {
    %c0_i32 = arith.constant 0 : i32
    %c0_i32_0 = arith.constant 0 : i32
    return %arg0, %c0_i32 : i32, i32
  }
  func.func @transform_1(%arg0: i32) -> (i32, i32) {
    %c0_i32 = arith.constant 0 : i32
    %c0_i32_0 = arith.constant 0 : i32
    return %arg0, %c0_i32 : i32, i32
  }
  func.func @transform_2(%arg0: i32) -> (i32, i32) {
    %c0_i32 = arith.constant 0 : i32
    %c0_i32_0 = arith.constant 0 : i32
    %c0_i32_1 = arith.constant 0 : i32
    return %c0_i32, %c0_i32_0 : i32, i32
  }
  func.func @transform_3(%arg0: i32) -> (i32, i32) {
    %c0_i32 = arith.constant 0 : i32
    %c0_i32_0 = arith.constant 0 : i32
    %c0_i32_1 = arith.constant 0 : i32
    return %c0_i32, %c0_i32_0 : i32, i32
  }
  func.func @transform_4(%arg0: i32) -> (i32, i32) {
    %c0_i32 = arith.constant 0 : i32
    %c0_i32_0 = arith.constant 0 : i32
    %c0_i32_1 = arith.constant 0 : i32
    return %c0_i32, %c0_i32_0 : i32, i32
  }
  func.func @transform_5(%arg0: i32) -> (i32, i32) {
    %c0_i32 = arith.constant 0 : i32
    %c0_i32_0 = arith.constant 0 : i32
    %c0_i32_1 = arith.constant 0 : i32
    return %c0_i32, %c0_i32_0 : i32, i32
  }
  func.func @transform_6(%arg0: i32) -> (i32, i32) {
    %c0_i32 = arith.constant 0 : i32
    %c0_i32_0 = arith.constant 0 : i32
    %c0_i32_1 = arith.constant 0 : i32
    return %c0_i32, %c0_i32_0 : i32, i32
  }
  func.func @transform_7(%arg0: i32) -> (i32, i32) {
    %c0_i32 = arith.constant 0 : i32
    %c0_i32_0 = arith.constant 0 : i32
    %c0_i32_1 = arith.constant 0 : i32
    return %c0_i32, %c0_i32_0 : i32, i32
  }
  func.func @transform_8(%arg0: i32) -> (i32, i32) {
    %c0_i32 = arith.constant 0 : i32
    %c0_i32_0 = arith.constant 0 : i32
    %c0_i32_1 = arith.constant 0 : i32
    return %c0_i32, %c0_i32_0 : i32, i32
  }
  func.func @transform_9(%arg0: i32) -> (i32, i32) {
    %c0_i32 = arith.constant 0 : i32
    %c0_i32_0 = arith.constant 0 : i32
    return %arg0, %c0_i32 : i32, i32
  }
}

</mosaic_0001>

<llo_original>
// kernel: q_critic_forward.1
$region0: #{q_critic_forward.1}
  #allocation0 [shape = 'u32[]', space=smem, size = 0x4, offset = 0x4, fixed_abs, tag = 'smem constant byte address 0x4 - core index']
  #allocation1 [shape = 'u32[72,128]{1,0:T(1,128)}', space=vmem, size = 0x9000, scoped, tag = 'internal scratch']
  %s0 = inlined_call_operand.vmem [shape: f32[8,16], index: 0, kind: input, shape index: {}]
  %s1 = inlined_call_operand.vmem [shape: f32[8,4], index: 1, kind: input, shape index: {}]
  %s2 = inlined_call_operand.vmem [shape: bf16[16,256], index: 2, kind: input, shape index: {}]
  %s3 = inlined_call_operand.vmem [shape: bf16[4,256], index: 3, kind: input, shape index: {}]
  %s4 = inlined_call_operand.vmem [shape: f32[1,256], index: 4, kind: input, shape index: {}]
  %s5 = inlined_call_operand.hbm [shape: bf16[256,128], index: 5, kind: input, shape index: {}]
  %s6 = inlined_call_operand.vmem [shape: f32[1,128], index: 6, kind: input, shape index: {}]
  %s7 = inlined_call_operand.vmem [shape: bf16[128,2], index: 7, kind: input, shape index: {}]
  %s8 = inlined_call_operand.vmem [shape: f32[1,2], index: 8, kind: input, shape index: {}]
  %s9 = inlined_call_operand.vmem [shape: f32[8,2], index: 9, kind: output, shape index: {}]
  %s10 = sld [smem:[#allocation0]]
  $region50: #{q_critic_forward.1} parent=0
    _
  %s12 = ssub.s32 1, %s10
  %s13 = scalar_select 0, %s12, %s10
  $region1: #{q_critic_forward.1} parent=0
    #allocation2 [shape = 'u8[65536]{0}', space=vmem, size = 0x10000, scoped, tag = 'input window, operand 5, single buffered']
    #allocation3 [shape = 's32[1]{0}', space=sflag, size = 0x4, scoped, tag = 'scoped memory for q_critic_forward.1']
    %14 = vsyncpa [#allocation3], 0
    // Predicated region
    $region2: #{q_critic_forward.1} parent=1 // pred_check
      _
    $region3: #{q_critic_forward.1} parent=1 // pred_check_branch
      %16 = sbr.rel (0) target = $region5
    $region4: #{q_critic_forward.1} parent=1 // pred_region
      _
    $region5: #{q_critic_forward.1} parent=1 // pred_fallthru
      _
    // Predicated region
    $region6: #{q_critic_forward.1} parent=1 // pred_check
      _
    $region7: #{q_critic_forward.1} parent=1 // pred_check_branch
      %18 = sbr.rel (0) target = $region9
    $region8: #{q_critic_forward.1} parent=1 // pred_region
      _
    $region9: #{q_critic_forward.1} parent=1 // pred_fallthru
      _
    // Predicated region
    $region10: #{q_critic_forward.1} parent=1 // pred_check
      _
    $region11: #{q_critic_forward.1} parent=1 // pred_check_branch
      %20 = sbr.rel (0) target = $region13
    $region12: #{q_critic_forward.1} parent=1 // pred_region
      _
    $region13: #{q_critic_forward.1} parent=1 // pred_fallthru
      _
    // Predicated region
    $region14: #{q_critic_forward.1} parent=1 // pred_check
      _
    $region15: #{q_critic_forward.1} parent=1 // pred_check_branch
      %22 = sbr.rel (0) target = $region17
    $region16: #{q_critic_forward.1} parent=1 // pred_region
      _
    $region17: #{q_critic_forward.1} parent=1 // pred_fallthru
      _
    // Predicated region
    $region18: #{q_critic_forward.1} parent=1 // pred_check
      _
    $region19: #{q_critic_forward.1} parent=1 // pred_check_branch
      %24 = sbr.rel (0) target = $region21
    $region20: #{q_critic_forward.1} parent=1 // pred_region
      _
    $region21: #{q_critic_forward.1} parent=1 // pred_fallthru
      _
    // Predicated region
    $region22: #{q_critic_forward.1} parent=1 // pred_check
      _
    $region23: #{q_critic_forward.1} parent=1 // pred_check_branch
      %26 = sbr.rel (0) target = $region25
    $region24: #{q_critic_forward.1} parent=1 // pred_region
      %28 = vsyncadd [#allocation3], 0
      %s29 = sshll.u32 %s5, 4
      %s30 = int_to_ptr.hbm [resolvable:$true] %s29
      %s31 = sshll.u32 [#allocation2], 4
      %s32 = int_to_ptr.vmem [resolvable:$true] %s31
      %37 = dma.hbm_to_vmem [thread:$0]  %s30, 2048, %s32, [#allocation3], 64, 64, 4
    $region25: #{q_critic_forward.1} parent=1 // pred_fallthru
      _
    // Predicated region
    $region26: #{q_critic_forward.1} parent=1 // pred_check
      _
    $region27: #{q_critic_forward.1} parent=1 // pred_check_branch
      %39 = sbr.rel (0) target = $region29
    $region28: #{q_critic_forward.1} parent=1 // pred_region
      _
    $region29: #{q_critic_forward.1} parent=1 // pred_fallthru
      _
    // Predicated region
    $region30: #{q_critic_forward.1} parent=1 // pred_check
      _
    $region31: #{q_critic_forward.1} parent=1 // pred_check_branch
      %41 = sbr.rel (0) target = $region33
    $region32: #{q_critic_forward.1} parent=1 // pred_region
      _
    $region33: #{q_critic_forward.1} parent=1 // pred_fallthru
      _
    // Predicated region
    $region34: #{q_critic_forward.1} parent=1 // pred_check
      _
    $region35: #{q_critic_forward.1} parent=1 // pred_check_branch
      %43 = sbr.rel (0) target = $region37
    $region36: #{q_critic_forward.1} parent=1 // pred_region
      _
    $region37: #{q_critic_forward.1} parent=1 // pred_fallthru
      _
    // Predicated region
    $region38: #{q_critic_forward.1} parent=1 // pred_check
      _
    $region39: #{q_critic_forward.1} parent=1 // pred_check_branch
      %45 = sbr.rel (0) target = $region41
    $region40: #{q_critic_forward.1} parent=1 // pred_region
      %47 = dma.done [#allocation3], 2048
    $region41: #{q_critic_forward.1} parent=1 // pred_fallthru
      _
    %v49 = vld [vmem:[%s0] sm:$0xff]
    %v50 = vpack.c.bf16 %v49, %v49
    %v51 = vld [vmem:[%s1] sm:$0xff]
    %v52 = vpack.c.bf16 %v51, %v51
    %v53 = vld [vmem:[%s2] sm:$0xff]
    %v54 = vld [vmem:[%s2 + $0x8] sm:$0xff]
    %v55 = vld [vmem:[%s3] sm:$0xf]
    %57 = vst [vmem:[#allocation1] ss:$4 sm:$0xff] %v55
    %v58 = vld.sshfl [vmem:[#allocation1] sm:$0xff pattern:$0x73625140]
    %v59 = vld.sshfl [vmem:[#allocation1 + $0x8] sm:$0xff pattern:$0x73625140]
    %vm60 = vcmask 31744
    %v62 = vsel %vm60, %v52, 0
    %vm64 = vcmask 1041408
    %v65 = vsel %vm64, %v58, 0
    %v67 = vsel %vm64, %v59, 0
    %69 = vmatpush.bf16.msra.mxu0 0
    %70 = vmatpush.bf16.msra.mxu0 0
    %71 = vmatpush.bf16.msra.mxu0 0
    %72 = vmatpush.bf16.msra.mxu0 0
    %73 = vmatpush.bf16.msra.mxu0 0
    %74 = vmatpush.bf16.msra.mxu0 0
    %75 = vmatpush.bf16.msra.mxu0 0
    %76 = vmatpush.bf16.msra.mxu0 %v65
    %77 = vmatmul.bf16.gmra.mxu0 %v62
    %v78 = vpop.f32.mrf.mxu0
    %v79 = vadd.f32 0.0, %v78
    %v80 = vpop.f32.mrf.mxu0
    %81 = vdwg.mxu0
    %82 = vmatpush.bf16.msra.mxu0 0
    %83 = vmatpush.bf16.msra.mxu0 0
    %84 = vmatpush.bf16.msra.mxu0 0
    %85 = vmatpush.bf16.msra.mxu0 0
    %86 = vmatpush.bf16.msra.mxu0 0
    %87 = vmatpush.bf16.msra.mxu0 0
    %88 = vmatpush.bf16.msra.mxu0 0
    %89 = vmatpush.bf16.msra.mxu0 %v67
    %90 = vmatmul.bf16.gmra.mxu0 %v62
    %v91 = vpop.f32.mrf.mxu0
    %v92 = vadd.f32 0.0, %v91
    %v93 = vpop.f32.mrf.mxu0
    %94 = vdwg.mxu0
    %v97 = vunpack.c.l.b16 %v53
    %v98 = vunpack.c.h.b16 %v53
    %v99 = vunpack.c.l.b16 %v54
    %v100 = vunpack.c.h.b16 %v54
    %v101 = vpack.c.b16 %v99, %v97
    %v102 = vpack.c.b16 %v100, %v98
    %vm105 = vcmask 130048
    %v107 = vsel %vm105, %v50, 0
    %109 = vmatpush.bf16.msra.mxu0 0
    %110 = vmatpush.bf16.msra.mxu0 0
    %111 = vmatpush.bf16.msra.mxu0 0
    %112 = vmatpush.bf16.msra.mxu0 0
    %113 = vmatpush.bf16.msra.mxu0 0
    %114 = vmatpush.bf16.msra.mxu0 0
    %115 = vmatpush.bf16.msra.mxu0 0
    %116 = vmatpush.bf16.msra.mxu0 %v101
    %117 = vmatmul.bf16.gmra.mxu0 %v107
    %v118 = vpop.f32.mrf.mxu0
    %v119 = vadd.f32 %v79, %v118
    %v120 = vpop.f32.mrf.mxu0
    %121 = vdwg.mxu0
    %122 = vmatpush.bf16.msra.mxu0 0
    %123 = vmatpush.bf16.msra.mxu0 0
    %124 = vmatpush.bf16.msra.mxu0 0
    %125 = vmatpush.bf16.msra.mxu0 0
    %126 = vmatpush.bf16.msra.mxu0 0
    %127 = vmatpush.bf16.msra.mxu0 0
    %128 = vmatpush.bf16.msra.mxu0 0
    %129 = vmatpush.bf16.msra.mxu0 %v102
    %130 = vmatmul.bf16.gmra.mxu0 %v107
    %v131 = vpop.f32.mrf.mxu0
    %v132 = vadd.f32 %v92, %v131
    %v133 = vpop.f32.mrf.mxu0
    %134 = vdwg.mxu0
    %v135 = vld [vmem:[%s4] sm:$0x3]
    %v137 = vperm.slane %v135, 0
    %v138 = vperm.slane %v135, 1
    %v141 = vadd.f32 %v119, %v137
    %v142 = vadd.f32 %v132, %v138
    %v143 = vmax.f32 %v141, 0.0
    %v144 = vmax.f32 %v142, 0.0
    %v145 = vpack.c.bf16 %v143, %v143
    %v146 = vpack.c.bf16 %v144, %v144
    %v147 = vld [vmem:[#allocation2] sm:$0xf]
    %v148 = vld [vmem:[#allocation2 + $0x4] sm:$0xf]
    %v149 = vld [vmem:[#allocation2 + $0x8] sm:$0xf]
    %v150 = vld [vmem:[#allocation2 + $0xc] sm:$0xf]
    %v151 = vld [vmem:[#allocation2 + $0x10] sm:$0xf]
    %v152 = vld [vmem:[#allocation2 + $0x14] sm:$0xf]
    %v153 = vld [vmem:[#allocation2 + $0x18] sm:$0xf]
    %v154 = vld [vmem:[#allocation2 + $0x1c] sm:$0xf]
    %v155 = vld [vmem:[#allocation2 + $0x20] sm:$0xf]
    %v156 = vld [vmem:[#allocation2 + $0x24] sm:$0xf]
    %v157 = vld [vmem:[#allocation2 + $0x28] sm:$0xf]
    %v158 = vld [vmem:[#allocation2 + $0x2c] sm:$0xf]
    %v159 = vld [vmem:[#allocation2 + $0x30] sm:$0xf]
    %v160 = vld [vmem:[#allocation2 + $0x34] sm:$0xf]
    %v161 = vld [vmem:[#allocation2 + $0x38] sm:$0xf]
    %v162 = vld [vmem:[#allocation2 + $0x3c] sm:$0xf]
    %v163 = vld [vmem:[#allocation2 + $0x40] sm:$0xf]
    %v164 = vld [vmem:[#allocation2 + $0x44] sm:$0xf]
    %v165 = vld [vmem:[#allocation2 + $0x48] sm:$0xf]
    %v166 = vld [vmem:[#allocation2 + $0x4c] sm:$0xf]
    %v167 = vld [vmem:[#allocation2 + $0x50] sm:$0xf]
    %v168 = vld [vmem:[#allocation2 + $0x54] sm:$0xf]
    %v169 = vld [vmem:[#allocation2 + $0x58] sm:$0xf]
    %v170 = vld [vmem:[#allocation2 + $0x5c] sm:$0xf]
    %v171 = vld [vmem:[#allocation2 + $0x60] sm:$0xf]
    %v172 = vld [vmem:[#allocation2 + $0x64] sm:$0xf]
    %v173 = vld [vmem:[#allocation2 + $0x68] sm:$0xf]
    %v174 = vld [vmem:[#allocation2 + $0x6c] sm:$0xf]
    %v175 = vld [vmem:[#allocation2 + $0x70] sm:$0xf]
    %v176 = vld [vmem:[#allocation2 + $0x74] sm:$0xf]
    %v177 = vld [vmem:[#allocation2 + $0x78] sm:$0xf]
    %v178 = vld [vmem:[#allocation2 + $0x7c] sm:$0xf]
    %v179 = vld [vmem:[%s6] sm:$0x1]
    %v181 = vperm.slane %v179, 0
    %v215 = vunpack.c.l.b16 %v147
    %v216 = vunpack.c.l.b16 %v148
    %v217 = vunpack.c.l.b16 %v149
    %v218 = vunpack.c.l.b16 %v150
    %v219 = vunpack.c.l.b16 %v151
    %v220 = vunpack.c.l.b16 %v152
    %v221 = vunpack.c.l.b16 %v153
    %v222 = vunpack.c.l.b16 %v154
    %v223 = vunpack.c.l.b16 %v155
    %v224 = vunpack.c.l.b16 %v156
    %v225 = vunpack.c.l.b16 %v157
    %v226 = vunpack.c.l.b16 %v158
    %v227 = vunpack.c.l.b16 %v159
    %v228 = vunpack.c.l.b16 %v160
    %v229 = vunpack.c.l.b16 %v161
    %v230 = vunpack.c.l.b16 %v162
    %v231 = vunpack.c.l.b16 %v163
    %v232 = vunpack.c.l.b16 %v164
    %v233 = vunpack.c.l.b16 %v165
    %v234 = vunpack.c.l.b16 %v166
    %v235 = vunpack.c.l.b16 %v167
    %v236 = vunpack.c.l.b16 %v168
    %v237 = vunpack.c.l.b16 %v169
    %v238 = vunpack.c.l.b16 %v170
    %v239 = vunpack.c.l.b16 %v171
    %v240 = vunpack.c.l.b16 %v172
    %v241 = vunpack.c.l.b16 %v173
    %v242 = vunpack.c.l.b16 %v174
    %v243 = vunpack.c.l.b16 %v175
    %v244 = vunpack.c.l.b16 %v176
    %v245 = vunpack.c.l.b16 %v177
    %v246 = vunpack.c.l.b16 %v178
    %v247 = vpack.c.b16 %v216, %v215
    %v248 = vpack.c.b16 %v218, %v217
    %v249 = vpack.c.b16 %v220, %v219
    %v250 = vpack.c.b16 %v222, %v221
    %v251 = vpack.c.b16 %v224, %v223
    %v252 = vpack.c.b16 %v226, %v225
    %v253 = vpack.c.b16 %v228, %v227
    %v254 = vpack.c.b16 %v230, %v229
    %v255 = vpack.c.b16 %v232, %v231
    %v256 = vpack.c.b16 %v234, %v233
    %v257 = vpack.c.b16 %v236, %v235
    %v258 = vpack.c.b16 %v238, %v237
    %v259 = vpack.c.b16 %v240, %v239
    %v260 = vpack.c.b16 %v242, %v241
    %v261 = vpack.c.b16 %v244, %v243
    %v262 = vpack.c.b16 %v246, %v245
    %279 = vmatpush.bf16.msra.mxu0 %v254
    %280 = vmatpush.bf16.msra.mxu0 %v253
    %281 = vmatpush.bf16.msra.mxu0 %v252
    %282 = vmatpush.bf16.msra.mxu0 %v251
    %283 = vmatpush.bf16.msra.mxu0 %v250
    %284 = vmatpush.bf16.msra.mxu0 %v249
    %285 = vmatpush.bf16.msra.mxu0 %v248
    %286 = vmatpush.bf16.msra.mxu0 %v247
    %287 = vmatmul.bf16.gmra.mxu0 %v145
    %v288 = vpop.f32.mrf.mxu0
    %v289 = vadd.f32 %v181, %v288
    %v290 = vpop.f32.mrf.mxu0
    %291 = vdwg.mxu0
    %292 = vmatpush.bf16.msra.mxu0 %v262
    %293 = vmatpush.bf16.msra.mxu0 %v261
    %294 = vmatpush.bf16.msra.mxu0 %v260
    %295 = vmatpush.bf16.msra.mxu0 %v259
    %296 = vmatpush.bf16.msra.mxu0 %v258
    %297 = vmatpush.bf16.msra.mxu0 %v257
    %298 = vmatpush.bf16.msra.mxu0 %v256
    %299 = vmatpush.bf16.msra.mxu0 %v255
    %300 = vmatmul.bf16.gmra.mxu0 %v146
    %v301 = vpop.f32.mrf.mxu0
    %v302 = vadd.f32 %v289, %v301
    %v303 = vpop.f32.mrf.mxu0
    %304 = vdwg.mxu0
    %v305 = vmax.f32 %v302, 0.0
    %v306 = vpack.c.bf16 %v305, %v305
    %v307 = vld [vmem:[%s7] sm:$0xf]
    %v308 = vld [vmem:[%s7 + $0x4] sm:$0xf]
    %v309 = vld [vmem:[%s7 + $0x8] sm:$0xf]
    %v310 = vld [vmem:[%s7 + $0xc] sm:$0xf]
    %v311 = vld [vmem:[%s7 + $0x10] sm:$0xf]
    %v312 = vld [vmem:[%s7 + $0x14] sm:$0xf]
    %v313 = vld [vmem:[%s7 + $0x18] sm:$0xf]
    %v314 = vld [vmem:[%s7 + $0x1c] sm:$0xf]
    %v315 = vld [vmem:[%s7 + $0x20] sm:$0xf]
    %v316 = vld [vmem:[%s7 + $0x24] sm:$0xf]
    %v317 = vld [vmem:[%s7 + $0x28] sm:$0xf]
    %v318 = vld [vmem:[%s7 + $0x2c] sm:$0xf]
    %v319 = vld [vmem:[%s7 + $0x30] sm:$0xf]
    %v320 = vld [vmem:[%s7 + $0x34] sm:$0xf]
    %v321 = vld [vmem:[%s7 + $0x38] sm:$0xf]
    %v322 = vld [vmem:[%s7 + $0x3c] sm:$0xf]
    %v323 = vld [vmem:[%s8] sm:$0x1]
    %v325 = vperm.slane %v323, 0
    %v343 = vunpack.c.l.b16 %v307
    %v344 = vunpack.c.l.b16 %v308
    %v345 = vunpack.c.l.b16 %v309
    %v346 = vunpack.c.l.b16 %v310
    %v347 = vunpack.c.l.b16 %v311
    %v348 = vunpack.c.l.b16 %v312
    %v349 = vunpack.c.l.b16 %v313
    %v350 = vunpack.c.l.b16 %v314
    %v351 = vunpack.c.l.b16 %v315
    %v352 = vunpack.c.l.b16 %v316
    %v353 = vunpack.c.l.b16 %v317
    %v354 = vunpack.c.l.b16 %v318
    %v355 = vunpack.c.l.b16 %v319
    %v356 = vunpack.c.l.b16 %v320
    %v357 = vunpack.c.l.b16 %v321
    %v358 = vunpack.c.l.b16 %v322
    %v359 = vpack.c.b16 %v344, %v343
    %v360 = vpack.c.b16 %v346, %v345
    %v361 = vpack.c.b16 %v348, %v347
    %v362 = vpack.c.b16 %v350, %v349
    %v363 = vpack.c.b16 %v352, %v351
    %v364 = vpack.c.b16 %v354, %v353
    %v365 = vpack.c.b16 %v356, %v355
    %v366 = vpack.c.b16 %v358, %v357
    %375 = vmatpush.bf16.msra.mxu0 %v366
    %376 = vmatpush.bf16.msra.mxu0 %v365
    %377 = vmatpush.bf16.msra.mxu0 %v364
    %378 = vmatpush.bf16.msra.mxu0 %v363
    %379 = vmatpush.bf16.msra.mxu0 %v362
    %380 = vmatpush.bf16.msra.mxu0 %v361
    %381 = vmatpush.bf16.msra.mxu0 %v360
    %382 = vmatpush.bf16.msra.mxu0 %v359
    %383 = vmatmul.bf16.gmra.mxu0 %v306
    %v384 = vpop.f32.mrf.mxu0
    %v385 = vadd.f32 %v325, %v384
    %v386 = vpop.f32.mrf.mxu0
    %387 = vdwg.mxu0
    %vm388 = vcmask 15360
    %389 = vst.msk [vmem:[%s9] sm:$0xff] %vm388, %v385
    // Predicated region
    $region42: #{q_critic_forward.1} parent=1 // pred_check
      _
    $region43: #{q_critic_forward.1} parent=1 // pred_check_branch
      %391 = sbr.rel (0) target = $region45
    $region44: #{q_critic_forward.1} parent=1 // pred_region
      _
    $region45: #{q_critic_forward.1} parent=1 // pred_fallthru
      _
    // Predicated region
    $region46: #{q_critic_forward.1} parent=1 // pred_check
      _
    $region47: #{q_critic_forward.1} parent=1 // pred_check_branch
      %393 = sbr.rel (0) target = $region49
    $region48: #{q_critic_forward.1} parent=1 // pred_region
      _
    $region49: #{q_critic_forward.1} parent=1 // pred_fallthru
      _
    %394 = vsyncpa [#allocation3], 1

</llo_original>
